<compile_context>
chip_gen: v7x
topology: tpu7x:2x2x1
jax: 0.10.0
libtpu: 0.0.40
codegen_flags: <defaults>
</compile_context>

<pallas_src>
import jax
import jax.numpy as jnp
from jax.experimental import pallas as pl
from jax.experimental.pallas import tpu as pltpu


def _round_up(x, m):
    return (x + m - 1) // m * m


def mlp_kernel(x_ref, w1_ref, b1_ref, w2_ref, b2_ref, w3_ref, b3_ref, o_ref):
    # In-kernel cast f32 -> bf16 (VPU slot, free for this HBM-bound kernel).
    x = x_ref[...].astype(w1_ref.dtype)
    # Layer 1: Linear(512, 256) + ReLU   (bf16 matmul, f32 accumulate/epilogue)
    h1 = jnp.dot(x, w1_ref[...], preferred_element_type=jnp.float32)
    h1 = jnp.maximum(h1 + b1_ref[...], 0.0)
    # Layer 2: Linear(256, 128-padded) + ReLU  (padded cols are exactly zero)
    h2 = jnp.dot(h1.astype(w2_ref.dtype), w2_ref[...],
                 preferred_element_type=jnp.float32)
    h2 = jnp.maximum(h2 + b2_ref[...], 0.0)
    # Layer 3: Linear(128-padded, n_classes)   (padded w3 rows are zero)
    out = jnp.dot(h2.astype(w3_ref.dtype), w3_ref[...],
                  preferred_element_type=jnp.float32)
    o_ref[...] = (out + b3_ref[...]).astype(o_ref.dtype)


def prepare_params(params, *, mm_dtype=jnp.bfloat16):
    """One-time parameter preparation (cast + layer-2/3 lane padding).

    Call once, reuse across forward calls, so no per-call convert/pad XLA ops.
    Weights are stored (in_features, out_features) so the kernel computes
    x @ W + b, matching torch's x @ W.T + b.
    """
    h2 = params["w2"].shape[1]
    h2_pad = _round_up(h2, 128)
    pad_cols = ((0, 0), (0, h2_pad - h2))
    pad_rows = ((0, h2_pad - h2), (0, 0))
    return dict(
        w1=params["w1"].astype(mm_dtype),
        b1=params["b1"].astype(jnp.float32),
        w2=jnp.pad(params["w2"], pad_cols).astype(mm_dtype),
        b2=jnp.pad(params["b2"], pad_cols).astype(jnp.float32),
        w3=jnp.pad(params["w3"], pad_rows).astype(mm_dtype),
        b3=params["b3"].astype(jnp.float32),
    )


def naive_network_forward(x, prepared, *, tm=1024):
    """NaiveNetwork forward as one Pallas kernel.

    x: (B, 512) float32
    prepared: output of prepare_params()
    """
    w1, b1 = prepared["w1"], prepared["b1"]
    w2, b2 = prepared["w2"], prepared["b2"]
    w3, b3 = prepared["w3"], prepared["b3"]
    B, D_in = x.shape
    H1 = w1.shape[1]
    H2 = w2.shape[1]
    n_classes = w3.shape[1]

    # Batch tile: big, sublane-aligned, no padding copies (ragged last block
    # is handled by Pallas masked output stores).
    tm_eff = min(tm, _round_up(B, 8))
    # v7x has 2 TensorCores: for large batches guarantee >= 2 grid steps so the
    # "parallel" axis actually shards across both cores.
    if B >= 512:
        tm_eff = min(tm_eff, _round_up(pl.cdiv(B, 2), 8))
    grid = (pl.cdiv(B, tm_eff),)

    flops = 2 * B * (D_in * H1 + H1 * H2 + H2 * n_classes)
    bytes_accessed = (
        x.size * x.dtype.itemsize
        + B * n_classes * 4
        + sum(a.size * a.dtype.itemsize for a in (w1, b1, w2, b2, w3, b3))
    )
    cost = pl.CostEstimate(flops=flops, transcendentals=0,
                           bytes_accessed=bytes_accessed)

    # Weights/biases are tiny and have constant index_maps, so they stay
    # resident in VMEM across the grid; only x / out tiles are pipelined.
    def full(arr):
        return pl.BlockSpec(arr.shape, lambda i: (0, 0))

    out = pl.pallas_call(
        mlp_kernel,
        out_shape=jax.ShapeDtypeStruct((B, n_classes), jnp.float32),
        grid_spec=pltpu.PrefetchScalarGridSpec(
            num_scalar_prefetch=0,
            grid=grid,
            in_specs=[
                pl.BlockSpec((tm_eff, D_in), lambda i: (i, 0)),   # x tile (f32)
                full(w1), full(b1),
                full(w2), full(b2),
                full(w3), full(b3),
            ],
            out_specs=pl.BlockSpec((tm_eff, n_classes), lambda i: (i, 0)),
        ),
        compiler_params=pltpu.CompilerParams(
            dimension_semantics=("parallel",),
        ),
        cost_estimate=cost,
    )(x, w1, b1, w2, b2, w3, b3)
    return out


def init_params(key, n_classes):
    """Deterministic init mimicking torch.nn.Linear's U(-k, k)."""
    def linear_init(key, fan_in, fan_out):
        kw, kb = jax.random.split(key)
        bound = 1.0 / jnp.sqrt(fan_in)
        w = jax.random.uniform(kw, (fan_in, fan_out), jnp.float32, -bound, bound)
        b = jax.random.uniform(kb, (1, fan_out), jnp.float32, -bound, bound)
        return w, b

    k1, k2, k3 = jax.random.split(key, 3)
    w1, b1 = linear_init(k1, 512, 256)
    w2, b2 = linear_init(k2, 256, 64)
    w3, b3 = linear_init(k3, 64, n_classes)
    return dict(w1=w1, b1=b1, w2=w2, b2=b2, w3=w3, b3=b3)


def reference_forward_f32(x, p):
    h1 = jnp.maximum(x @ p["w1"] + p["b1"], 0.0)
    h2 = jnp.maximum(h1 @ p["w2"] + p["b2"], 0.0)
    return h2 @ p["w3"] + p["b3"]


def reference_forward_bf16(x, p):
    """Emulates the kernel's bf16-matmul / f32-accumulate numerics."""
    bf = jnp.bfloat16
    h1 = jnp.dot(x.astype(bf), p["w1"].astype(bf),
                 preferred_element_type=jnp.float32) + p["b1"]
    h1 = jnp.maximum(h1, 0.0)
    h2 = jnp.dot(h1.astype(bf), p["w2"].astype(bf),
                 preferred_element_type=jnp.float32) + p["b2"]
    h2 = jnp.maximum(h2, 0.0)
    return jnp.dot(h2.astype(bf), p["w3"].astype(bf),
                   preferred_element_type=jnp.float32) + p["b3"]


if __name__ == "__main__":
    key = jax.random.PRNGKey(0)
    kx, kp, kx2 = jax.random.split(key, 3)

    n_classes = 10
    params = init_params(kp, n_classes)
    prepared = prepare_params(params)   # one-time cast/pad, reused below

    # Small, aligned batch (single grid step).
    batch = 8
    x = jax.random.normal(kx, (batch, 512), dtype=jnp.float32)
    out = jax.block_until_ready(naive_network_forward(x, prepared))
    assert out.shape == (batch, n_classes)
    ref_bf16 = reference_forward_bf16(x, params)
    ref_f32 = reference_forward_f32(x, params)
    assert jnp.allclose(out, ref_bf16, atol=2e-3, rtol=2e-3), "mismatch vs bf16 ref"
    assert jnp.allclose(out, ref_f32, atol=8e-2, rtol=8e-2), "mismatch vs f32 ref"

    # Ragged batch + multi-step grid path (exercises masked last block, no pad copy).
    batch2 = 300
    x2 = jax.random.normal(kx2, (batch2, 512), dtype=jnp.float32)
    out2 = jax.block_until_ready(naive_network_forward(x2, prepared, tm=128))
    assert out2.shape == (batch2, n_classes)
    ref2_bf16 = reference_forward_bf16(x2, params)
    assert jnp.allclose(out2, ref2_bf16, atol=2e-3, rtol=2e-3), "mismatch (ragged)"

    print("KERNEL_OK")
</pallas_src>

<mosaic_0001>
module attributes {stable_mosaic.version = 11 : i64} {
  func.func @mlp_kernel(%arg0: i32, %arg1: memref<8x512xf32, #tpu.memory_space<vmem>>, %arg2: memref<512x256xbf16, #tpu.memory_space<vmem>>, %arg3: memref<1x256xf32, #tpu.memory_space<vmem>>, %arg4: memref<256x128xbf16, #tpu.memory_space<vmem>>, %arg5: memref<1x128xf32, #tpu.memory_space<vmem>>, %arg6: memref<128x10xbf16, #tpu.memory_space<vmem>>, %arg7: memref<1x10xf32, #tpu.memory_space<vmem>>, %arg8: memref<8x10xf32, #tpu.memory_space<vmem>>) attributes {dimension_semantics = [#tpu.dimension_semantics<parallel>], iteration_bounds = array<i64: 1>, scalar_prefetch = 0 : i64, scratch_operands = 0 : i64, tpu.core_type = #tpu.core_type<tc>, window_params = [{transform_indices = @transform_0, window_bounds = array<i64: 8, 512>}, {pipeline_mode = #tpu.pipeline_mode<synchronous>, transform_indices = @transform_1, window_bounds = array<i64: 512, 256>}, {pipeline_mode = #tpu.pipeline_mode<synchronous>, transform_indices = @transform_2, window_bounds = array<i64: 1, 256>}, {pipeline_mode = #tpu.pipeline_mode<synchronous>, transform_indices = @transform_3, window_bounds = array<i64: 256, 128>}, {pipeline_mode = #tpu.pipeline_mode<synchronous>, transform_indices = @transform_4, window_bounds = array<i64: 1, 128>}, {pipeline_mode = #tpu.pipeline_mode<synchronous>, transform_indices = @transform_5, window_bounds = array<i64: 128, 10>}, {pipeline_mode = #tpu.pipeline_mode<synchronous>, transform_indices = @transform_6, window_bounds = array<i64: 1, 10>}, {transform_indices = @transform_7, window_bounds = array<i64: 8, 10>}]} {
    %c0 = arith.constant 0 : index
    %c0_0 = arith.constant 0 : index
    %0 = vector.load %arg1[%c0, %c0_0] : memref<8x512xf32, #tpu.memory_space<vmem>>, vector<8x512xf32>
    %1 = arith.truncf %0 : vector<8x512xf32> to vector<8x512xbf16>
    %c0_1 = arith.constant 0 : index
    %c0_2 = arith.constant 0 : index
    %2 = vector.load %arg2[%c0_1, %c0_2] : memref<512x256xbf16, #tpu.memory_space<vmem>>, vector<512x256xbf16>
    %cst = arith.constant dense<0.000000e+00> : vector<8x256xf32>
    %3 = tpu.matmul %1, %2, %cst {dimension_numbers = #tpu.dot_dimension_numbers<[1], [0], [0], [1], [0, 0, 1, 1], [], []>} : vector<8x512xbf16>, vector<512x256xbf16>, vector<8x256xf32> -> vector<8x256xf32>
    %c0_3 = arith.constant 0 : index
    %c0_4 = arith.constant 0 : index
    %4 = vector.load %arg3[%c0_3, %c0_4] : memref<1x256xf32, #tpu.memory_space<vmem>>, vector<1x256xf32>
    %5 = vector.broadcast %4 : vector<1x256xf32> to vector<8x256xf32>
    %6 = arith.addf %3, %5 : vector<8x256xf32>
    %cst_5 = arith.constant 0.000000e+00 : f32
    %7 = vector.broadcast %cst_5 : f32 to vector<8x256xf32>
    %8 = arith.maximumf %6, %7 : vector<8x256xf32>
    %9 = arith.truncf %8 : vector<8x256xf32> to vector<8x256xbf16>
    %c0_6 = arith.constant 0 : index
    %c0_7 = arith.constant 0 : index
    %10 = vector.load %arg4[%c0_6, %c0_7] : memref<256x128xbf16, #tpu.memory_space<vmem>>, vector<256x128xbf16>
    %cst_8 = arith.constant dense<0.000000e+00> : vector<8x128xf32>
    %11 = tpu.matmul %9, %10, %cst_8 {dimension_numbers = #tpu.dot_dimension_numbers<[1], [0], [0], [1], [0, 0, 1, 1], [], []>} : vector<8x256xbf16>, vector<256x128xbf16>, vector<8x128xf32> -> vector<8x128xf32>
    %c0_9 = arith.constant 0 : index
    %c0_10 = arith.constant 0 : index
    %12 = vector.load %arg5[%c0_9, %c0_10] : memref<1x128xf32, #tpu.memory_space<vmem>>, vector<1x128xf32>
    %13 = vector.broadcast %12 : vector<1x128xf32> to vector<8x128xf32>
    %14 = arith.addf %11, %13 : vector<8x128xf32>
    %cst_11 = arith.constant 0.000000e+00 : f32
    %15 = vector.broadcast %cst_11 : f32 to vector<8x128xf32>
    %16 = arith.maximumf %14, %15 : vector<8x128xf32>
    %17 = arith.truncf %16 : vector<8x128xf32> to vector<8x128xbf16>
    %c0_12 = arith.constant 0 : index
    %c0_13 = arith.constant 0 : index
    %18 = vector.load %arg6[%c0_12, %c0_13] : memref<128x10xbf16, #tpu.memory_space<vmem>>, vector<128x10xbf16>
    %cst_14 = arith.constant dense<0.000000e+00> : vector<8x10xf32>
    %19 = tpu.matmul %17, %18, %cst_14 {dimension_numbers = #tpu.dot_dimension_numbers<[1], [0], [0], [1], [0, 0, 1, 1], [], []>} : vector<8x128xbf16>, vector<128x10xbf16>, vector<8x10xf32> -> vector<8x10xf32>
    %c0_15 = arith.constant 0 : index
    %c0_16 = arith.constant 0 : index
    %20 = vector.load %arg7[%c0_15, %c0_16] : memref<1x10xf32, #tpu.memory_space<vmem>>, vector<1x10xf32>
    %21 = vector.broadcast %20 : vector<1x10xf32> to vector<8x10xf32>
    %22 = arith.addf %19, %21 : vector<8x10xf32>
    %c0_17 = arith.constant 0 : index
    %c0_18 = arith.constant 0 : index
    %23 = vector.load %arg8[%c0_17, %c0_18] : memref<8x10xf32, #tpu.memory_space<vmem>>, vector<8x10xf32>
    tpu.vector_store %arg8[%c0_17, %c0_18], %22 {strides = array<i32>} : memref<8x10xf32, #tpu.memory_space<vmem>>, vector<8x10xf32>,
    return
  }
  func.func @transform_0(%arg0: i32) -> (i32, i32) {
    %c0_i32 = arith.constant 0 : i32
    %c0_i32_0 = arith.constant 0 : i32
    return %arg0, %c0_i32 : i32, i32
  }
  func.func @transform_1(%arg0: i32) -> (i32, i32) {
    %c0_i32 = arith.constant 0 : i32
    %c0_i32_0 = arith.constant 0 : i32
    %c0_i32_1 = arith.constant 0 : i32
    return %c0_i32, %c0_i32_0 : i32, i32
  }
  func.func @transform_2(%arg0: i32) -> (i32, i32) {
    %c0_i32 = arith.constant 0 : i32
    %c0_i32_0 = arith.constant 0 : i32
    %c0_i32_1 = arith.constant 0 : i32
    return %c0_i32, %c0_i32_0 : i32, i32
  }
  func.func @transform_3(%arg0: i32) -> (i32, i32) {
    %c0_i32 = arith.constant 0 : i32
    %c0_i32_0 = arith.constant 0 : i32
    %c0_i32_1 = arith.constant 0 : i32
    return %c0_i32, %c0_i32_0 : i32, i32
  }
  func.func @transform_4(%arg0: i32) -> (i32, i32) {
    %c0_i32 = arith.constant 0 : i32
    %c0_i32_0 = arith.constant 0 : i32
    %c0_i32_1 = arith.constant 0 : i32
    return %c0_i32, %c0_i32_0 : i32, i32
  }
  func.func @transform_5(%arg0: i32) -> (i32, i32) {
    %c0_i32 = arith.constant 0 : i32
    %c0_i32_0 = arith.constant 0 : i32
    %c0_i32_1 = arith.constant 0 : i32
    return %c0_i32, %c0_i32_0 : i32, i32
  }
  func.func @transform_6(%arg0: i32) -> (i32, i32) {
    %c0_i32 = arith.constant 0 : i32
    %c0_i32_0 = arith.constant 0 : i32
    %c0_i32_1 = arith.constant 0 : i32
    return %c0_i32, %c0_i32_0 : i32, i32
  }
  func.func @transform_7(%arg0: i32) -> (i32, i32) {
    %c0_i32 = arith.constant 0 : i32
    %c0_i32_0 = arith.constant 0 : i32
    return %arg0, %c0_i32 : i32, i32
  }
}

</mosaic_0001>

<llo_original>
// kernel: tpu_custom_call.1
$region0: #{tpu_custom_call.1}
  #allocation0 [shape = 'u32[]', space=smem, size = 0x4, offset = 0x4, fixed_abs, tag = 'smem constant byte address 0x4 - core index']
  #allocation1 [shape = 'u32[144,128]{1,0:T(1,128)}', space=vmem, size = 0x12000, scoped, tag = 'internal scratch']
  %s0 = inlined_call_operand.vmem [shape: f32[8,512], index: 0, kind: input, shape index: {}]
  %s1 = inlined_call_operand.hbm [shape: bf16[512,256], index: 1, kind: input, shape index: {}]
  %s2 = inlined_call_operand.vmem [shape: f32[1,256], index: 2, kind: input, shape index: {}]
  %s3 = inlined_call_operand.hbm [shape: bf16[256,128], index: 3, kind: input, shape index: {}]
  %s4 = inlined_call_operand.vmem [shape: f32[1,128], index: 4, kind: input, shape index: {}]
  %s5 = inlined_call_operand.vmem [shape: bf16[128,10], index: 5, kind: input, shape index: {}]
  %s6 = inlined_call_operand.vmem [shape: f32[1,10], index: 6, kind: input, shape index: {}]
  %s7 = inlined_call_operand.hbm [shape: f32[8,10], index: 7, kind: output, shape index: {}]
  %s8 = sld [smem:[#allocation0]]
  $region46: #{tpu_custom_call.1} parent=0
    _
  %s10 = ssub.s32 1, %s8
  %s11 = scalar_select 0, %s10, %s8
  $region1: #{tpu_custom_call.1} parent=0
    #allocation2 [shape = 'u8[262144]{0}', space=vmem, size = 0x40000, scoped, tag = 'input window, operand 1, single buffered']
    #allocation3 [shape = 's32[1]{0}', space=sflag, size = 0x4, scoped, tag = 'scoped memory for tpu_custom_call.1']
    #allocation4 [shape = 's32[1]{0}', space=sflag, size = 0x4, scoped, tag = 'scoped memory for tpu_custom_call.1']
    #allocation5 [shape = 'u8[65536]{0}', space=vmem, size = 0x10000, scoped, tag = 'input window, operand 3, single buffered']
    #allocation6 [shape = 's32[1]{0}', space=sflag, size = 0x4, scoped, tag = 'scoped memory for tpu_custom_call.1']
    #allocation7 [shape = 'u8[4096]{0}', space=vmem, size = 0x1000, scoped, tag = 'output window, operand 0, single buffered']
    %12 = vsyncpa [#allocation3], 0
    %13 = vsyncpa [#allocation6], 0
    %14 = vsyncpa [#allocation4], 0
    // Predicated region
    $region2: #{tpu_custom_call.1} parent=1 // pred_check
      _
    $region3: #{tpu_custom_call.1} parent=1 // pred_check_branch
      %16 = sbr.rel (0) target = $region5
    $region4: #{tpu_custom_call.1} parent=1 // pred_region
      _
    $region5: #{tpu_custom_call.1} parent=1 // pred_fallthru
      _
    // Predicated region
    $region6: #{tpu_custom_call.1} parent=1 // pred_check
      _
    $region7: #{tpu_custom_call.1} parent=1 // pred_check_branch
      %18 = sbr.rel (0) target = $region9
    $region8: #{tpu_custom_call.1} parent=1 // pred_region
      %s20 = ssub.s32 8192, 8192
      %21 = vsyncadd [#allocation3], %s20
      %s22 = sshll.u32 [#allocation2], 4
      %s23 = int_to_ptr.vmem [resolvable:$true] %s22
      %28 = dma.hbm_to_vmem [thread:$0]  %s1, 8192, %s23, [#allocation3], 128, 128, 8
    $region9: #{tpu_custom_call.1} parent=1 // pred_fallthru
      _
    // Predicated region
    $region10: #{tpu_custom_call.1} parent=1 // pred_check
      _
    $region11: #{tpu_custom_call.1} parent=1 // pred_check_branch
      %30 = sbr.rel (0) target = $region13
    $region12: #{tpu_custom_call.1} parent=1 // pred_region
      _
    $region13: #{tpu_custom_call.1} parent=1 // pred_fallthru
      _
    // Predicated region
    $region14: #{tpu_custom_call.1} parent=1 // pred_check
      _
    $region15: #{tpu_custom_call.1} parent=1 // pred_check_branch
      %32 = sbr.rel (0) target = $region17
    $region16: #{tpu_custom_call.1} parent=1 // pred_region
      %s34 = ssub.s32 2048, 2048
      %35 = vsyncadd [#allocation6], %s34
      %s36 = sshll.u32 [#allocation5], 4
      %s37 = int_to_ptr.vmem [resolvable:$true] %s36
      %42 = dma.hbm_to_vmem [thread:$0]  %s3, 2048, %s37, [#allocation6], 64, 64, 4
    $region17: #{tpu_custom_call.1} parent=1 // pred_fallthru
      _
    // Predicated region
    $region18: #{tpu_custom_call.1} parent=1 // pred_check
      _
    $region19: #{tpu_custom_call.1} parent=1 // pred_check_branch
      %44 = sbr.rel (0) target = $region21
    $region20: #{tpu_custom_call.1} parent=1 // pred_region
      _
    $region21: #{tpu_custom_call.1} parent=1 // pred_fallthru
      _
    // Predicated region
    $region22: #{tpu_custom_call.1} parent=1 // pred_check
      _
    $region23: #{tpu_custom_call.1} parent=1 // pred_check_branch
      %46 = sbr.rel (0) target = $region25
    $region24: #{tpu_custom_call.1} parent=1 // pred_region
      _
    $region25: #{tpu_custom_call.1} parent=1 // pred_fallthru
      _
    // Predicated region
    $region26: #{tpu_custom_call.1} parent=1 // pred_check
      _
    $region27: #{tpu_custom_call.1} parent=1 // pred_check_branch
      %48 = sbr.rel (0) target = $region29
    $region28: #{tpu_custom_call.1} parent=1 // pred_region
      _
    $region29: #{tpu_custom_call.1} parent=1 // pred_fallthru
      _
    // Predicated region
    $region30: #{tpu_custom_call.1} parent=1 // pred_check
      _
    $region31: #{tpu_custom_call.1} parent=1 // pred_check_branch
      %50 = sbr.rel (0) target = $region33
    $region32: #{tpu_custom_call.1} parent=1 // pred_region
      %51 = dma.done [#allocation3], 8192
    $region33: #{tpu_custom_call.1} parent=1 // pred_fallthru
      _
    // Predicated region
    $region34: #{tpu_custom_call.1} parent=1 // pred_check
      _
    $region35: #{tpu_custom_call.1} parent=1 // pred_check_branch
      %53 = sbr.rel (0) target = $region37
    $region36: #{tpu_custom_call.1} parent=1 // pred_region
      %54 = dma.done [#allocation6], 2048
    $region37: #{tpu_custom_call.1} parent=1 // pred_fallthru
      _
    %v56 = vld [vmem:[%s0] sm:$0xff]
    %v57 = vld [vmem:[%s0 + $0x8] sm:$0xff]
    %v58 = vld [vmem:[%s0 + $0x10] sm:$0xff]
    %v59 = vld [vmem:[%s0 + $0x18] sm:$0xff]
    %v60 = vpack.c.bf16 %v56, %v56
    %v61 = vpack.c.bf16 %v57, %v57
    %v62 = vpack.c.bf16 %v58, %v58
    %v63 = vpack.c.bf16 %v59, %v59
    %v64 = vld [vmem:[#allocation2] sm:$0xff]
    %v65 = vld [vmem:[#allocation2 + $0x8] sm:$0xff]
    %v66 = vld [vmem:[#allocation2 + $0x10] sm:$0xff]
    %v67 = vld [vmem:[#allocation2 + $0x18] sm:$0xff]
    %v68 = vld [vmem:[#allocation2 + $0x20] sm:$0xff]
    %v69 = vld [vmem:[#allocation2 + $0x28] sm:$0xff]
    %v70 = vld [vmem:[#allocation2 + $0x30] sm:$0xff]
    %v71 = vld [vmem:[#allocation2 + $0x38] sm:$0xff]
    %v72 = vld [vmem:[#allocation2 + $0x40] sm:$0xff]
    %v73 = vld [vmem:[#allocation2 + $0x48] sm:$0xff]
    %v74 = vld [vmem:[#allocation2 + $0x50] sm:$0xff]
    %v75 = vld [vmem:[#allocation2 + $0x58] sm:$0xff]
    %v76 = vld [vmem:[#allocation2 + $0x60] sm:$0xff]
    %v77 = vld [vmem:[#allocation2 + $0x68] sm:$0xff]
    %v78 = vld [vmem:[#allocation2 + $0x70] sm:$0xff]
    %v79 = vld [vmem:[#allocation2 + $0x78] sm:$0xff]
    %v80 = vld [vmem:[#allocation2 + $0x80] sm:$0xff]
    %v81 = vld [vmem:[#allocation2 + $0x88] sm:$0xff]
    %v82 = vld [vmem:[#allocation2 + $0x90] sm:$0xff]
    %v83 = vld [vmem:[#allocation2 + $0x98] sm:$0xff]
    %v84 = vld [vmem:[#allocation2 + $0xa0] sm:$0xff]
    %v85 = vld [vmem:[#allocation2 + $0xa8] sm:$0xff]
    %v86 = vld [vmem:[#allocation2 + $0xb0] sm:$0xff]
    %v87 = vld [vmem:[#allocation2 + $0xb8] sm:$0xff]
    %v88 = vld [vmem:[#allocation2 + $0xc0] sm:$0xff]
    %v89 = vld [vmem:[#allocation2 + $0xc8] sm:$0xff]
    %v90 = vld [vmem:[#allocation2 + $0xd0] sm:$0xff]
    %v91 = vld [vmem:[#allocation2 + $0xd8] sm:$0xff]
    %v92 = vld [vmem:[#allocation2 + $0xe0] sm:$0xff]
    %v93 = vld [vmem:[#allocation2 + $0xe8] sm:$0xff]
    %v94 = vld [vmem:[#allocation2 + $0xf0] sm:$0xff]
    %v95 = vld [vmem:[#allocation2 + $0xf8] sm:$0xff]
    %v96 = vld [vmem:[#allocation2 + $0x100] sm:$0xff]
    %v97 = vld [vmem:[#allocation2 + $0x108] sm:$0xff]
    %v98 = vld [vmem:[#allocation2 + $0x110] sm:$0xff]
    %v99 = vld [vmem:[#allocation2 + $0x118] sm:$0xff]
    %v100 = vld [vmem:[#allocation2 + $0x120] sm:$0xff]
    %v101 = vld [vmem:[#allocation2 + $0x128] sm:$0xff]
    %v102 = vld [vmem:[#allocation2 + $0x130] sm:$0xff]
    %v103 = vld [vmem:[#allocation2 + $0x138] sm:$0xff]
    %v104 = vld [vmem:[#allocation2 + $0x140] sm:$0xff]
    %v105 = vld [vmem:[#allocation2 + $0x148] sm:$0xff]
    %v106 = vld [vmem:[#allocation2 + $0x150] sm:$0xff]
    %v107 = vld [vmem:[#allocation2 + $0x158] sm:$0xff]
    %v108 = vld [vmem:[#allocation2 + $0x160] sm:$0xff]
    %v109 = vld [vmem:[#allocation2 + $0x168] sm:$0xff]
    %v110 = vld [vmem:[#allocation2 + $0x170] sm:$0xff]
    %v111 = vld [vmem:[#allocation2 + $0x178] sm:$0xff]
    %v112 = vld [vmem:[#allocation2 + $0x180] sm:$0xff]
    %v113 = vld [vmem:[#allocation2 + $0x188] sm:$0xff]
    %v114 = vld [vmem:[#allocation2 + $0x190] sm:$0xff]
    %v115 = vld [vmem:[#allocation2 + $0x198] sm:$0xff]
    %v116 = vld [vmem:[#allocation2 + $0x1a0] sm:$0xff]
    %v117 = vld [vmem:[#allocation2 + $0x1a8] sm:$0xff]
    %v118 = vld [vmem:[#allocation2 + $0x1b0] sm:$0xff]
    %v119 = vld [vmem:[#allocation2 + $0x1b8] sm:$0xff]
    %v120 = vld [vmem:[#allocation2 + $0x1c0] sm:$0xff]
    %v121 = vld [vmem:[#allocation2 + $0x1c8] sm:$0xff]
    %v122 = vld [vmem:[#allocation2 + $0x1d0] sm:$0xff]
    %v123 = vld [vmem:[#allocation2 + $0x1d8] sm:$0xff]
    %v124 = vld [vmem:[#allocation2 + $0x1e0] sm:$0xff]
    %v125 = vld [vmem:[#allocation2 + $0x1e8] sm:$0xff]
    %v126 = vld [vmem:[#allocation2 + $0x1f0] sm:$0xff]
    %v127 = vld [vmem:[#allocation2 + $0x1f8] sm:$0xff]
    %v128 = vld [vmem:[%s2] sm:$0x3]
    %v130 = vlaneseq
    %v131 = vshrl.u32 %v130, 7
    %v132 = vsub.s32 0, %v131
    %v133 = vrot.slane %v128, %v132
    %v134 = vlaneseq
    %v135 = vshrl.u32 %v134, 7
    %v136 = vsub.s32 1, %v135
    %v137 = vrot.slane %v128, %v136
    %v204 = vunpack.c.l.b16 %v64
    %v205 = vunpack.c.h.b16 %v64
    %v206 = vunpack.c.l.b16 %v65
    %v207 = vunpack.c.h.b16 %v65
    %v208 = vunpack.c.l.b16 %v66
    %v209 = vunpack.c.h.b16 %v66
    %v210 = vunpack.c.l.b16 %v67
    %v211 = vunpack.c.h.b16 %v67
    %v212 = vunpack.c.l.b16 %v68
    %v213 = vunpack.c.h.b16 %v68
    %v214 = vunpack.c.l.b16 %v69
    %v215 = vunpack.c.h.b16 %v69
    %v216 = vunpack.c.l.b16 %v70
    %v217 = vunpack.c.h.b16 %v70
    %v218 = vunpack.c.l.b16 %v71
    %v219 = vunpack.c.h.b16 %v71
    %v220 = vunpack.c.l.b16 %v72
    %v221 = vunpack.c.h.b16 %v72
    %v222 = vunpack.c.l.b16 %v73
    %v223 = vunpack.c.h.b16 %v73
    %v224 = vunpack.c.l.b16 %v74
    %v225 = vunpack.c.h.b16 %v74
    %v226 = vunpack.c.l.b16 %v75
    %v227 = vunpack.c.h.b16 %v75
    %v228 = vunpack.c.l.b16 %v76
    %v229 = vunpack.c.h.b16 %v76
    %v230 = vunpack.c.l.b16 %v77
    %v231 = vunpack.c.h.b16 %v77
    %v232 = vunpack.c.l.b16 %v78
    %v233 = vunpack.c.h.b16 %v78
    %v234 = vunpack.c.l.b16 %v79
    %v235 = vunpack.c.h.b16 %v79
    %v236 = vunpack.c.l.b16 %v80
    %v237 = vunpack.c.h.b16 %v80
    %v238 = vunpack.c.l.b16 %v81
    %v239 = vunpack.c.h.b16 %v81
    %v240 = vunpack.c.l.b16 %v82
    %v241 = vunpack.c.h.b16 %v82
    %v242 = vunpack.c.l.b16 %v83
    %v243 = vunpack.c.h.b16 %v83
    %v244 = vunpack.c.l.b16 %v84
    %v245 = vunpack.c.h.b16 %v84
    %v246 = vunpack.c.l.b16 %v85
    %v247 = vunpack.c.h.b16 %v85
    %v248 = vunpack.c.l.b16 %v86
    %v249 = vunpack.c.h.b16 %v86
    %v250 = vunpack.c.l.b16 %v87
    %v251 = vunpack.c.h.b16 %v87
    %v252 = vunpack.c.l.b16 %v88
    %v253 = vunpack.c.h.b16 %v88
    %v254 = vunpack.c.l.b16 %v89
    %v255 = vunpack.c.h.b16 %v89
    %v256 = vunpack.c.l.b16 %v90
    %v257 = vunpack.c.h.b16 %v90
    %v258 = vunpack.c.l.b16 %v91
    %v259 = vunpack.c.h.b16 %v91
    %v260 = vunpack.c.l.b16 %v92
    %v261 = vunpack.c.h.b16 %v92
    %v262 = vunpack.c.l.b16 %v93
    %v263 = vunpack.c.h.b16 %v93
    %v264 = vunpack.c.l.b16 %v94
    %v265 = vunpack.c.h.b16 %v94
    %v266 = vunpack.c.l.b16 %v95
    %v267 = vunpack.c.h.b16 %v95
    %v268 = vunpack.c.l.b16 %v96
    %v269 = vunpack.c.h.b16 %v96
    %v270 = vunpack.c.l.b16 %v97
    %v271 = vunpack.c.h.b16 %v97
    %v272 = vunpack.c.l.b16 %v98
    %v273 = vunpack.c.h.b16 %v98
    %v274 = vunpack.c.l.b16 %v99
    %v275 = vunpack.c.h.b16 %v99
    %v276 = vunpack.c.l.b16 %v100
    %v277 = vunpack.c.h.b16 %v100
    %v278 = vunpack.c.l.b16 %v101
    %v279 = vunpack.c.h.b16 %v101
    %v280 = vunpack.c.l.b16 %v102
    %v281 = vunpack.c.h.b16 %v102
    %v282 = vunpack.c.l.b16 %v103
    %v283 = vunpack.c.h.b16 %v103
    %v284 = vunpack.c.l.b16 %v104
    %v285 = vunpack.c.h.b16 %v104
    %v286 = vunpack.c.l.b16 %v105
    %v287 = vunpack.c.h.b16 %v105
    %v288 = vunpack.c.l.b16 %v106
    %v289 = vunpack.c.h.b16 %v106
    %v290 = vunpack.c.l.b16 %v107
    %v291 = vunpack.c.h.b16 %v107
    %v292 = vunpack.c.l.b16 %v108
    %v293 = vunpack.c.h.b16 %v108
    %v294 = vunpack.c.l.b16 %v109
    %v295 = vunpack.c.h.b16 %v109
    %v296 = vunpack.c.l.b16 %v110
    %v297 = vunpack.c.h.b16 %v110
    %v298 = vunpack.c.l.b16 %v111
    %v299 = vunpack.c.h.b16 %v111
    %v300 = vunpack.c.l.b16 %v112
    %v301 = vunpack.c.h.b16 %v112
    %v302 = vunpack.c.l.b16 %v113
    %v303 = vunpack.c.h.b16 %v113
    %v304 = vunpack.c.l.b16 %v114
    %v305 = vunpack.c.h.b16 %v114
    %v306 = vunpack.c.l.b16 %v115
    %v307 = vunpack.c.h.b16 %v115
    %v308 = vunpack.c.l.b16 %v116
    %v309 = vunpack.c.h.b16 %v116
    %v310 = vunpack.c.l.b16 %v117
    %v311 = vunpack.c.h.b16 %v117
    %v312 = vunpack.c.l.b16 %v118
    %v313 = vunpack.c.h.b16 %v118
    %v314 = vunpack.c.l.b16 %v119
    %v315 = vunpack.c.h.b16 %v119
    %v316 = vunpack.c.l.b16 %v120
    %v317 = vunpack.c.h.b16 %v120
    %v318 = vunpack.c.l.b16 %v121
    %v319 = vunpack.c.h.b16 %v121
    %v320 = vunpack.c.l.b16 %v122
    %v321 = vunpack.c.h.b16 %v122
    %v322 = vunpack.c.l.b16 %v123
    %v323 = vunpack.c.h.b16 %v123
    %v324 = vunpack.c.l.b16 %v124
    %v325 = vunpack.c.h.b16 %v124
    %v326 = vunpack.c.l.b16 %v125
    %v327 = vunpack.c.h.b16 %v125
    %v328 = vunpack.c.l.b16 %v126
    %v329 = vunpack.c.h.b16 %v126
    %v330 = vunpack.c.l.b16 %v127
    %v331 = vunpack.c.h.b16 %v127
    %v332 = vpack.c.b16 %v206, %v204
    %v333 = vpack.c.b16 %v207, %v205
    %v334 = vpack.c.b16 %v210, %v208
    %v335 = vpack.c.b16 %v211, %v209
    %v336 = vpack.c.b16 %v214, %v212
    %v337 = vpack.c.b16 %v215, %v213
    %v338 = vpack.c.b16 %v218, %v216
    %v339 = vpack.c.b16 %v219, %v217
    %v340 = vpack.c.b16 %v222, %v220
    %v341 = vpack.c.b16 %v223, %v221
    %v342 = vpack.c.b16 %v226, %v224
    %v343 = vpack.c.b16 %v227, %v225
    %v344 = vpack.c.b16 %v230, %v228
    %v345 = vpack.c.b16 %v231, %v229
    %v346 = vpack.c.b16 %v234, %v232
    %v347 = vpack.c.b16 %v235, %v233
    %v348 = vpack.c.b16 %v238, %v236
    %v349 = vpack.c.b16 %v239, %v237
    %v350 = vpack.c.b16 %v242, %v240
    %v351 = vpack.c.b16 %v243, %v241
    %v352 = vpack.c.b16 %v246, %v244
    %v353 = vpack.c.b16 %v247, %v245
    %v354 = vpack.c.b16 %v250, %v248
    %v355 = vpack.c.b16 %v251, %v249
    %v356 = vpack.c.b16 %v254, %v252
    %v357 = vpack.c.b16 %v255, %v253
    %v358 = vpack.c.b16 %v258, %v256
    %v359 = vpack.c.b16 %v259, %v257
    %v360 = vpack.c.b16 %v262, %v260
    %v361 = vpack.c.b16 %v263, %v261
    %v362 = vpack.c.b16 %v266, %v264
    %v363 = vpack.c.b16 %v267, %v265
    %v364 = vpack.c.b16 %v270, %v268
    %v365 = vpack.c.b16 %v271, %v269
    %v366 = vpack.c.b16 %v274, %v272
    %v367 = vpack.c.b16 %v275, %v273
    %v368 = vpack.c.b16 %v278, %v276
    %v369 = vpack.c.b16 %v279, %v277
    %v370 = vpack.c.b16 %v282, %v280
    %v371 = vpack.c.b16 %v283, %v281
    %v372 = vpack.c.b16 %v286, %v284
    %v373 = vpack.c.b16 %v287, %v285
    %v374 = vpack.c.b16 %v290, %v288
    %v375 = vpack.c.b16 %v291, %v289
    %v376 = vpack.c.b16 %v294, %v292
    %v377 = vpack.c.b16 %v295, %v293
    %v378 = vpack.c.b16 %v298, %v296
    %v379 = vpack.c.b16 %v299, %v297
    %v380 = vpack.c.b16 %v302, %v300
    %v381 = vpack.c.b16 %v303, %v301
    %v382 = vpack.c.b16 %v306, %v304
    %v383 = vpack.c.b16 %v307, %v305
    %v384 = vpack.c.b16 %v310, %v308
    %v385 = vpack.c.b16 %v311, %v309
    %v386 = vpack.c.b16 %v314, %v312
    %v387 = vpack.c.b16 %v315, %v313
    %v388 = vpack.c.b16 %v318, %v316
    %v389 = vpack.c.b16 %v319, %v317
    %v390 = vpack.c.b16 %v322, %v320
    %v391 = vpack.c.b16 %v323, %v321
    %v392 = vpack.c.b16 %v326, %v324
    %v393 = vpack.c.b16 %v327, %v325
    %v394 = vpack.c.b16 %v330, %v328
    %v395 = vpack.c.b16 %v331, %v329
    %460 = vmatprep.subr.bf16.mxu0 %v333
    %461 = vmatpush1.bf16.msra.mxu0 %v332
    %462 = vmatprep.subr.bf16.mxu0 %v335
    %463 = vmatpush1.bf16.msra.mxu0 %v334
    %464 = vmatprep.subr.bf16.mxu0 %v337
    %465 = vmatpush1.bf16.msra.mxu0 %v336
    %466 = vmatprep.subr.bf16.mxu0 %v339
    %467 = vmatpush1.bf16.msra.mxu0 %v338
    %468 = vmatprep.subr.bf16.mxu0 %v341
    %469 = vmatpush1.bf16.msra.mxu0 %v340
    %470 = vmatprep.subr.bf16.mxu0 %v343
    %471 = vmatpush1.bf16.msra.mxu0 %v342
    %472 = vmatprep.subr.bf16.mxu0 %v345
    %473 = vmatpush1.bf16.msra.mxu0 %v344
    %474 = vmatprep.subr.bf16.mxu0 %v347
    %475 = vmatpush1.bf16.msra.mxu0 %v346
    %476 = vmatprep.subr.bf16.mxu0 %v349
    %477 = vmatpush1.bf16.msra.mxu0 %v348
    %478 = vmatprep.subr.bf16.mxu0 %v351
    %479 = vmatpush1.bf16.msra.mxu0 %v350
    %480 = vmatprep.subr.bf16.mxu0 %v353
    %481 = vmatpush1.bf16.msra.mxu0 %v352
    %482 = vmatprep.subr.bf16.mxu0 %v355
    %483 = vmatpush1.bf16.msra.mxu0 %v354
    %484 = vmatprep.subr.bf16.mxu0 %v357
    %485 = vmatpush1.bf16.msra.mxu0 %v356
    %486 = vmatprep.subr.bf16.mxu0 %v359
    %487 = vmatpush1.bf16.msra.mxu0 %v358
    %488 = vmatprep.subr.bf16.mxu0 %v361
    %489 = vmatpush1.bf16.msra.mxu0 %v360
    %490 = vmatprep.subr.bf16.mxu0 %v363
    %491 = vmatpush1.bf16.msra.mxu0 %v362
    %492 = vmatprep.mubr.bf16.mxu0 %v61
    %493 = vmatmul.mubr.bf16.gmra.mrb[0].mxu0 %v60
    %v494 = vpop.f32.mrb[0].mxu0
    %v495 = vadd.f32 %v133, %v494
    %v496 = vpop.f32.mrb[0].mxu0
    %v497 = vadd.f32 %v137, %v496
    %v498 = vpop.f32.mrb[0].mxu0
    %v499 = vpop.f32.mrb[0].mxu0
    %500 = vdwg.mxu0
    %501 = vmatprep.subr.bf16.mxu0 %v365
    %502 = vmatpush1.bf16.msra.mxu0 %v364
    %503 = vmatprep.subr.bf16.mxu0 %v367
    %504 = vmatpush1.bf16.msra.mxu0 %v366
    %505 = vmatprep.subr.bf16.mxu0 %v369
    %506 = vmatpush1.bf16.msra.mxu0 %v368
    %507 = vmatprep.subr.bf16.mxu0 %v371
    %508 = vmatpush1.bf16.msra.mxu0 %v370
    %509 = vmatprep.subr.bf16.mxu0 %v373
    %510 = vmatpush1.bf16.msra.mxu0 %v372
    %511 = vmatprep.subr.bf16.mxu0 %v375
    %512 = vmatpush1.bf16.msra.mxu0 %v374
    %513 = vmatprep.subr.bf16.mxu0 %v377
    %514 = vmatpush1.bf16.msra.mxu0 %v376
    %515 = vmatprep.subr.bf16.mxu0 %v379
    %516 = vmatpush1.bf16.msra.mxu0 %v378
    %517 = vmatprep.subr.bf16.mxu0 %v381
    %518 = vmatpush1.bf16.msra.mxu0 %v380
    %519 = vmatprep.subr.bf16.mxu0 %v383
    %520 = vmatpush1.bf16.msra.mxu0 %v382
    %521 = vmatprep.subr.bf16.mxu0 %v385
    %522 = vmatpush1.bf16.msra.mxu0 %v384
    %523 = vmatprep.subr.bf16.mxu0 %v387
    %524 = vmatpush1.bf16.msra.mxu0 %v386
    %525 = vmatprep.subr.bf16.mxu0 %v389
    %526 = vmatpush1.bf16.msra.mxu0 %v388
    %527 = vmatprep.subr.bf16.mxu0 %v391
    %528 = vmatpush1.bf16.msra.mxu0 %v390
    %529 = vmatprep.subr.bf16.mxu0 %v393
    %530 = vmatpush1.bf16.msra.mxu0 %v392
    %531 = vmatprep.subr.bf16.mxu0 %v395
    %532 = vmatpush1.bf16.msra.mxu0 %v394
    %533 = vmatprep.mubr.bf16.mxu0 %v63
    %534 = vmatmul.mubr.bf16.gmra.mrb[0].mxu0 %v62
    %v535 = vpop.f32.mrb[0].mxu0
    %v536 = vadd.f32 %v495, %v535
    %v537 = vpop.f32.mrb[0].mxu0
    %v538 = vadd.f32 %v497, %v537
    %v539 = vpop.f32.mrb[0].mxu0
    %v540 = vpop.f32.mrb[0].mxu0
    %541 = vdwg.mxu0
    %v542 = vmax.f32 %v536, 0.0
    %v543 = vmax.f32 %v538, 0.0
    %v544 = vpack.c.bf16 %v542, %v542
    %v545 = vpack.c.bf16 %v543, %v543
    %v546 = vld [vmem:[#allocation5] sm:$0xf]
    %v547 = vld [vmem:[#allocation5 + $0x4] sm:$0xf]
    %v548 = vld [vmem:[#allocation5 + $0x8] sm:$0xf]
    %v549 = vld [vmem:[#allocation5 + $0xc] sm:$0xf]
    %v550 = vld [vmem:[#allocation5 + $0x10] sm:$0xf]
    %v551 = vld [vmem:[#allocation5 + $0x14] sm:$0xf]
    %v552 = vld [vmem:[#allocation5 + $0x18] sm:$0xf]
    %v553 = vld [vmem:[#allocation5 + $0x1c] sm:$0xf]
    %v554 = vld [vmem:[#allocation5 + $0x20] sm:$0xf]
    %v555 = vld [vmem:[#allocation5 + $0x24] sm:$0xf]
    %v556 = vld [vmem:[#allocation5 + $0x28] sm:$0xf]
    %v557 = vld [vmem:[#allocation5 + $0x2c] sm:$0xf]
    %v558 = vld [vmem:[#allocation5 + $0x30] sm:$0xf]
    %v559 = vld [vmem:[#allocation5 + $0x34] sm:$0xf]
    %v560 = vld [vmem:[#allocation5 + $0x38] sm:$0xf]
    %v561 = vld [vmem:[#allocation5 + $0x3c] sm:$0xf]
    %v562 = vld [vmem:[#allocation5 + $0x40] sm:$0xf]
    %v563 = vld [vmem:[#allocation5 + $0x44] sm:$0xf]
    %v564 = vld [vmem:[#allocation5 + $0x48] sm:$0xf]
    %v565 = vld [vmem:[#allocation5 + $0x4c] sm:$0xf]
    %v566 = vld [vmem:[#allocation5 + $0x50] sm:$0xf]
    %v567 = vld [vmem:[#allocation5 + $0x54] sm:$0xf]
    %v568 = vld [vmem:[#allocation5 + $0x58] sm:$0xf]
    %v569 = vld [vmem:[#allocation5 + $0x5c] sm:$0xf]
    %v570 = vld [vmem:[#allocation5 + $0x60] sm:$0xf]
    %v571 = vld [vmem:[#allocation5 + $0x64] sm:$0xf]
    %v572 = vld [vmem:[#allocation5 + $0x68] sm:$0xf]
    %v573 = vld [vmem:[#allocation5 + $0x6c] sm:$0xf]
    %v574 = vld [vmem:[#allocation5 + $0x70] sm:$0xf]
    %v575 = vld [vmem:[#allocation5 + $0x74] sm:$0xf]
    %v576 = vld [vmem:[#allocation5 + $0x78] sm:$0xf]
    %v577 = vld [vmem:[#allocation5 + $0x7c] sm:$0xf]
    %v578 = vld [vmem:[%s4] sm:$0x1]
    %v580 = vlaneseq
    %v581 = vshrl.u32 %v580, 7
    %v582 = vsub.s32 0, %v581
    %v583 = vrot.slane %v578, %v582
    %v617 = vunpack.c.l.b16 %v546
    %v618 = vunpack.c.l.b16 %v547
    %v619 = vunpack.c.l.b16 %v548
    %v620 = vunpack.c.l.b16 %v549
    %v621 = vunpack.c.l.b16 %v550
    %v622 = vunpack.c.l.b16 %v551
    %v623 = vunpack.c.l.b16 %v552
    %v624 = vunpack.c.l.b16 %v553
    %v625 = vunpack.c.l.b16 %v554
    %v626 = vunpack.c.l.b16 %v555
    %v627 = vunpack.c.l.b16 %v556
    %v628 = vunpack.c.l.b16 %v557
    %v629 = vunpack.c.l.b16 %v558
    %v630 = vunpack.c.l.b16 %v559
    %v631 = vunpack.c.l.b16 %v560
    %v632 = vunpack.c.l.b16 %v561
    %v633 = vunpack.c.l.b16 %v562
    %v634 = vunpack.c.l.b16 %v563
    %v635 = vunpack.c.l.b16 %v564
    %v636 = vunpack.c.l.b16 %v565
    %v637 = vunpack.c.l.b16 %v566
    %v638 = vunpack.c.l.b16 %v567
    %v639 = vunpack.c.l.b16 %v568
    %v640 = vunpack.c.l.b16 %v569
    %v641 = vunpack.c.l.b16 %v570
    %v642 = vunpack.c.l.b16 %v571
    %v643 = vunpack.c.l.b16 %v572
    %v644 = vunpack.c.l.b16 %v573
    %v645 = vunpack.c.l.b16 %v574
    %v646 = vunpack.c.l.b16 %v575
    %v647 = vunpack.c.l.b16 %v576
    %v648 = vunpack.c.l.b16 %v577
    %v649 = vpack.c.b16 %v618, %v617
    %v650 = vpack.c.b16 %v620, %v619
    %v651 = vpack.c.b16 %v622, %v621
    %v652 = vpack.c.b16 %v624, %v623
    %v653 = vpack.c.b16 %v626, %v625
    %v654 = vpack.c.b16 %v628, %v627
    %v655 = vpack.c.b16 %v630, %v629
    %v656 = vpack.c.b16 %v632, %v631
    %v657 = vpack.c.b16 %v634, %v633
    %v658 = vpack.c.b16 %v636, %v635
    %v659 = vpack.c.b16 %v638, %v637
    %v660 = vpack.c.b16 %v640, %v639
    %v661 = vpack.c.b16 %v642, %v641
    %v662 = vpack.c.b16 %v644, %v643
    %v663 = vpack.c.b16 %v646, %v645
    %v664 = vpack.c.b16 %v648, %v647
    %681 = vmatprep.subr.bf16.mxu0 0
    %682 = vmatpush1.bf16.msra.mxu0 %v649
    %683 = vmatprep.subr.bf16.mxu0 0
    %684 = vmatpush1.bf16.msra.mxu0 %v650
    %685 = vmatprep.subr.bf16.mxu0 0
    %686 = vmatpush1.bf16.msra.mxu0 %v651
    %687 = vmatprep.subr.bf16.mxu0 0
    %688 = vmatpush1.bf16.msra.mxu0 %v652
    %689 = vmatprep.subr.bf16.mxu0 0
    %690 = vmatpush1.bf16.msra.mxu0 %v653
    %691 = vmatprep.subr.bf16.mxu0 0
    %692 = vmatpush1.bf16.msra.mxu0 %v654
    %693 = vmatprep.subr.bf16.mxu0 0
    %694 = vmatpush1.bf16.msra.mxu0 %v655
    %695 = vmatprep.subr.bf16.mxu0 0
    %696 = vmatpush1.bf16.msra.mxu0 %v656
    %697 = vmatprep.subr.bf16.mxu0 0
    %698 = vmatpush1.bf16.msra.mxu0 %v657
    %699 = vmatprep.subr.bf16.mxu0 0
    %700 = vmatpush1.bf16.msra.mxu0 %v658
    %701 = vmatprep.subr.bf16.mxu0 0
    %702 = vmatpush1.bf16.msra.mxu0 %v659
    %703 = vmatprep.subr.bf16.mxu0 0
    %704 = vmatpush1.bf16.msra.mxu0 %v660
    %705 = vmatprep.subr.bf16.mxu0 0
    %706 = vmatpush1.bf16.msra.mxu0 %v661
    %707 = vmatprep.subr.bf16.mxu0 0
    %708 = vmatpush1.bf16.msra.mxu0 %v662
    %709 = vmatprep.subr.bf16.mxu0 0
    %710 = vmatpush1.bf16.msra.mxu0 %v663
    %711 = vmatprep.subr.bf16.mxu0 0
    %712 = vmatpush1.bf16.msra.mxu0 %v664
    %713 = vmatprep.mubr.bf16.mxu0 %v545
    %714 = vmatmul.mubr.bf16.gmra.mrb[0].mxu0 %v544
    %v715 = vpop.f32.mrb[0].mxu0
    %v716 = vadd.f32 %v583, %v715
    %v717 = vpop.f32.mrb[0].mxu0
    %v718 = vpop.f32.mrb[0].mxu0
    %v719 = vpop.f32.mrb[0].mxu0
    %720 = vdwg.mxu0
    %v721 = vmax.f32 %v716, 0.0
    %v722 = vpack.c.bf16 %v721, %v721
    %v723 = vld [vmem:[%s5] sm:$0xf]
    %v724 = vld [vmem:[%s5 + $0x4] sm:$0xf]
    %v725 = vld [vmem:[%s5 + $0x8] sm:$0xf]
    %v726 = vld [vmem:[%s5 + $0xc] sm:$0xf]
    %v727 = vld [vmem:[%s5 + $0x10] sm:$0xf]
    %v728 = vld [vmem:[%s5 + $0x14] sm:$0xf]
    %v729 = vld [vmem:[%s5 + $0x18] sm:$0xf]
    %v730 = vld [vmem:[%s5 + $0x1c] sm:$0xf]
    %v731 = vld [vmem:[%s5 + $0x20] sm:$0xf]
    %v732 = vld [vmem:[%s5 + $0x24] sm:$0xf]
    %v733 = vld [vmem:[%s5 + $0x28] sm:$0xf]
    %v734 = vld [vmem:[%s5 + $0x2c] sm:$0xf]
    %v735 = vld [vmem:[%s5 + $0x30] sm:$0xf]
    %v736 = vld [vmem:[%s5 + $0x34] sm:$0xf]
    %v737 = vld [vmem:[%s5 + $0x38] sm:$0xf]
    %v738 = vld [vmem:[%s5 + $0x3c] sm:$0xf]
    %v739 = vld [vmem:[%s6] sm:$0x1]
    %v741 = vlaneseq
    %v742 = vshrl.u32 %v741, 7
    %v743 = vsub.s32 0, %v742
    %v744 = vrot.slane %v739, %v743
    %v762 = vunpack.c.l.b16 %v723
    %v763 = vunpack.c.l.b16 %v724
    %v764 = vunpack.c.l.b16 %v725
    %v765 = vunpack.c.l.b16 %v726
    %v766 = vunpack.c.l.b16 %v727
    %v767 = vunpack.c.l.b16 %v728
    %v768 = vunpack.c.l.b16 %v729
    %v769 = vunpack.c.l.b16 %v730
    %v770 = vunpack.c.l.b16 %v731
    %v771 = vunpack.c.l.b16 %v732
    %v772 = vunpack.c.l.b16 %v733
    %v773 = vunpack.c.l.b16 %v734
    %v774 = vunpack.c.l.b16 %v735
    %v775 = vunpack.c.l.b16 %v736
    %v776 = vunpack.c.l.b16 %v737
    %v777 = vunpack.c.l.b16 %v738
    %v778 = vpack.c.b16 %v763, %v762
    %v779 = vpack.c.b16 %v765, %v764
    %v780 = vpack.c.b16 %v767, %v766
    %v781 = vpack.c.b16 %v769, %v768
    %v782 = vpack.c.b16 %v771, %v770
    %v783 = vpack.c.b16 %v773, %v772
    %v784 = vpack.c.b16 %v775, %v774
    %v785 = vpack.c.b16 %v777, %v776
    %794 = vmatprep.subr.bf16.mxu0 0
    %795 = vmatpush1.bf16.msra.mxu0 %v778
    %796 = vmatprep.subr.bf16.mxu0 0
    %797 = vmatpush1.bf16.msra.mxu0 %v779
    %798 = vmatprep.subr.bf16.mxu0 0
    %799 = vmatpush1.bf16.msra.mxu0 %v780
    %800 = vmatprep.subr.bf16.mxu0 0
    %801 = vmatpush1.bf16.msra.mxu0 %v781
    %802 = vmatprep.subr.bf16.mxu0 0
    %803 = vmatpush1.bf16.msra.mxu0 %v782
    %804 = vmatprep.subr.bf16.mxu0 0
    %805 = vmatpush1.bf16.msra.mxu0 %v783
    %806 = vmatprep.subr.bf16.mxu0 0
    %807 = vmatpush1.bf16.msra.mxu0 %v784
    %808 = vmatprep.subr.bf16.mxu0 0
    %809 = vmatpush1.bf16.msra.mxu0 %v785
    %810 = vmatprep.subr.bf16.mxu0 0
    %811 = vmatpush1.bf16.msra.mxu0 0
    %812 = vmatprep.subr.bf16.mxu0 0
    %813 = vmatpush1.bf16.msra.mxu0 0
    %814 = vmatprep.subr.bf16.mxu0 0
    %815 = vmatpush1.bf16.msra.mxu0 0
    %816 = vmatprep.subr.bf16.mxu0 0
    %817 = vmatpush1.bf16.msra.mxu0 0
    %818 = vmatprep.subr.bf16.mxu0 0
    %819 = vmatpush1.bf16.msra.mxu0 0
    %820 = vmatprep.subr.bf16.mxu0 0
    %821 = vmatpush1.bf16.msra.mxu0 0
    %822 = vmatprep.subr.bf16.mxu0 0
    %823 = vmatpush1.bf16.msra.mxu0 0
    %824 = vmatprep.subr.bf16.mxu0 0
    %825 = vmatpush1.bf16.msra.mxu0 0
    %826 = vmatprep.mubr.bf16.mxu0 0
    %827 = vmatmul.mubr.bf16.gmra.mrb[0].mxu0 %v722
    %v828 = vpop.f32.mrb[0].mxu0
    %v829 = vadd.f32 %v744, %v828
    %v830 = vpop.f32.mrb[0].mxu0
    %v831 = vpop.f32.mrb[0].mxu0
    %v832 = vpop.f32.mrb[0].mxu0
    %833 = vdwg.mxu0
    %vm834 = vcmask 80896
    %835 = vst.msk [vmem:[#allocation7] sm:$0xff] %vm834, %v829
    // Predicated region
    $region38: #{tpu_custom_call.1} parent=1 // pred_check
      _
    $region39: #{tpu_custom_call.1} parent=1 // pred_check_branch
      %837 = sbr.rel (0) target = $region41
    $region40: #{tpu_custom_call.1} parent=1 // pred_region
      %s839 = ssub.s32 128, 128
      %840 = vsyncadd [#allocation4], %s839
      %s842 = sshll.u32 [#allocation7], 4
      %s843 = int_to_ptr.vmem [resolvable:$true] %s842
      %845 = dma.vmem_to_hbm [thread:$0]  %s843, 128, %s7, [#allocation4]
    $region41: #{tpu_custom_call.1} parent=1 // pred_fallthru
      _
    // Predicated region
    $region42: #{tpu_custom_call.1} parent=1 // pred_check
      _
    $region43: #{tpu_custom_call.1} parent=1 // pred_check_branch
      %847 = sbr.rel (0) target = $region45
    $region44: #{tpu_custom_call.1} parent=1 // pred_region
      %848 = dma.done [#allocation4], 128
    $region45: #{tpu_custom_call.1} parent=1 // pred_fallthru
      _
    %849 = vsyncpa [#allocation3], 1
    %850 = vsyncpa [#allocation6], 1
    %851 = vsyncpa [#allocation4], 1

</llo_original>
